<compile_context>
chip_gen: v6e
topology: v6e:2x2x1
jax: 0.10.0
libtpu: 0.0.40
codegen_flags: <defaults>
</compile_context>

<pallas_src>
import functools
import math

import jax
import jax.numpy as jnp
from jax.experimental import pallas as pl
from jax.experimental.pallas import tpu as pltpu


def _gate_kernel(x1_ref, x2_ref,
                 wru1_ref, wru2_ref, bru_ref,
                 wp1_ref, wp2_ref, bp_ref,
                 out_ref):
    x1 = x1_ref[...]                       # (tm, D) f32 — kept f32 for the blend
    x2 = x2_ref[...]
    x1b = x1.astype(jnp.bfloat16)          # bf16 MXU operands, f32 accumulation
    x2b = x2.astype(jnp.bfloat16)

    D = out_ref.shape[-1]

    # Fused reset/update gates: one (tm, 2D) matmul pair.
    #   ru[:, :D]  -> reset logits,  ru[:, D:] -> update logits
    ru = (jnp.dot(x1b, wru1_ref[...], preferred_element_type=jnp.float32)
          + jnp.dot(x2b, wru2_ref[...], preferred_element_type=jnp.float32)
          + bru_ref[...])
    reset = jax.nn.sigmoid(ru[:, :D])
    update = jax.nn.sigmoid(ru[:, D:])

    # proposal = tanh([reset * x1, x2] @ Wp^T + bp)
    prop_lin = (jnp.dot((reset * x1).astype(jnp.bfloat16), wp1_ref[...],
                        preferred_element_type=jnp.float32)
                + jnp.dot(x2b, wp2_ref[...], preferred_element_type=jnp.float32)
                + bp_ref[...])
    proposal = jnp.tanh(prop_lin)

    # (1 - u) * x1 + u * p  ==  x1 + u * (p - x1)   (saves one multiply)
    out_ref[...] = (x1 + update * (proposal - x1)).astype(out_ref.dtype)


def _round_up(x, m):
    return (x + m - 1) // m * m


@functools.partial(jax.jit, static_argnames=("tm",))
def gate_selection_layer(x1, x2, params, *, tm=256):
    """x1, x2: (B, S, D) float32.  params: dict of fused/split bf16 weights.

    tm is the row tile (sweep 128/256/512 per chip); small inputs are handled
    by clamping the tile and zero-padding M to a tile multiple.
    """
    B, S, D = x1.shape
    M = B * S

    # Effective row tile: multiple of 8 sublanes, no larger than (padded) M.
    tm_eff = min(tm, _round_up(M, 8))
    M_pad = _round_up(M, tm_eff)

    x1f = x1.reshape(M, D)
    x2f = x2.reshape(M, D)
    if M_pad != M:
        pad = ((0, M_pad - M), (0, 0))
        x1f = jnp.pad(x1f, pad)
        x2f = jnp.pad(x2f, pad)

    row_spec = pl.BlockSpec((tm_eff, D), lambda i: (i, 0))
    # Weights / biases are grid-invariant: keep a single resident VMEM buffer.
    wru_spec = pl.BlockSpec((D, 2 * D), lambda i: (0, 0),
                            pipeline_mode=pl.Buffered(1))
    bru_spec = pl.BlockSpec((1, 2 * D), lambda i: (0, 0),
                            pipeline_mode=pl.Buffered(1))
    wp_spec = pl.BlockSpec((D, D), lambda i: (0, 0),
                           pipeline_mode=pl.Buffered(1))
    bp_spec = pl.BlockSpec((1, D), lambda i: (0, 0),
                           pipeline_mode=pl.Buffered(1))

    out = pl.pallas_call(
        _gate_kernel,
        out_shape=jax.ShapeDtypeStruct((M_pad, D), x1.dtype),
        grid_spec=pltpu.PrefetchScalarGridSpec(
            num_scalar_prefetch=0,
            grid=(M_pad // tm_eff,),
            in_specs=[row_spec, row_spec,
                      wru_spec, wru_spec, bru_spec,
                      wp_spec, wp_spec, bp_spec],
            out_specs=row_spec,
        ),
        compiler_params=pltpu.CompilerParams(
            dimension_semantics=("parallel",),
            vmem_limit_bytes=64 * 1024 * 1024),
    )(x1f, x2f,
      params["wru1"], params["wru2"], params["bru"],
      params["wp1"], params["wp2"], params["bp"])

    return out[:M].reshape(B, S, D)


def init_params(key, dim_model, weight_dtype=jnp.bfloat16):
    """Deterministic init matching nn.Linear(dim_model*2, dim_model) shapes.

    Returns (kernel params, f32 reference params).
    Kernel params:
      wru1, wru2 : (D, 2D) bf16  — fused [reset | update] halves for x1 / x2
      bru        : (1, 2D) f32   — fused [reset | update] bias
      wp1, wp2   : (D, D)  bf16  — proposal halves for (reset*x1) / x2
      bp         : (1, D)  f32
    """
    D = dim_model
    in_features = 2 * D
    bound = 1.0 / math.sqrt(float(in_features))
    keys = jax.random.split(key, 6)

    def linear(kw, kb):
        w = jax.random.uniform(kw, (D, in_features), jnp.float32, -bound, bound)
        b = jax.random.uniform(kb, (D,), jnp.float32, -bound, bound)
        return w, b

    wr, br = linear(keys[0], keys[1])
    wu, bu = linear(keys[2], keys[3])
    wp, bp = linear(keys[4], keys[5])

    def split_t(w):
        # y = cat([a, b]) @ w.T  ==  a @ w[:, :D].T + b @ w[:, D:].T
        return w[:, :D].T, w[:, D:].T

    wr1, wr2 = split_t(wr)
    wu1, wu2 = split_t(wu)
    wp1, wp2 = split_t(wp)

    params = {
        "wru1": jnp.concatenate([wr1, wu1], axis=1).astype(weight_dtype),
        "wru2": jnp.concatenate([wr2, wu2], axis=1).astype(weight_dtype),
        "bru": jnp.concatenate([br, bu]).reshape(1, 2 * D).astype(jnp.float32),
        "wp1": wp1.astype(weight_dtype),
        "wp2": wp2.astype(weight_dtype),
        "bp": bp.reshape(1, D).astype(jnp.float32),
    }
    # Un-split f32 copies for the pure-JAX reference.
    ref = {"wr": wr, "br": br, "wu": wu, "bu": bu, "wp": wp, "bp": bp}
    return params, ref


def reference_forward(x1, x2, ref):
    cat = jnp.concatenate([x1, x2], axis=-1)
    reset = jax.nn.sigmoid(cat @ ref["wr"].T + ref["br"])
    update = jax.nn.sigmoid(cat @ ref["wu"].T + ref["bu"])
    cat2 = jnp.concatenate([reset * x1, x2], axis=-1)
    proposal = jnp.tanh(cat2 @ ref["wp"].T + ref["bp"])
    return (1.0 - update) * x1 + update * proposal


if __name__ == "__main__":
    B, S, D = 2, 8, 32
    key = jax.random.PRNGKey(0)
    k1, k2, kp = jax.random.split(key, 3)

    x1 = jax.random.normal(k1, (B, S, D), jnp.float32)
    x2 = jax.random.normal(k2, (B, S, D), jnp.float32)
    params, ref = init_params(kp, D)

    out = gate_selection_layer(x1, x2, params)
    out = jax.block_until_ready(out)

    expected = reference_forward(x1, x2, ref)
    assert out.shape == (B, S, D)
    # bf16 weights / MXU inputs with f32 accumulation: loosen tolerance a bit.
    err = float(jnp.max(jnp.abs(out - expected)))
    assert jnp.allclose(out, expected, atol=2e-2, rtol=2e-2), err

    print("KERNEL_OK")
</pallas_src>

<mosaic_0001>
module attributes {stable_mosaic.version = 11 : i64} {
  func.func @_gate_kernel(%arg0: i32, %arg1: memref<16x32xf32, #tpu.memory_space<vmem>>, %arg2: memref<16x32xf32, #tpu.memory_space<vmem>>, %arg3: memref<32x64xbf16, #tpu.memory_space<vmem>>, %arg4: memref<32x64xbf16, #tpu.memory_space<vmem>>, %arg5: memref<1x64xf32, #tpu.memory_space<vmem>>, %arg6: memref<32x32xbf16, #tpu.memory_space<vmem>>, %arg7: memref<32x32xbf16, #tpu.memory_space<vmem>>, %arg8: memref<1x32xf32, #tpu.memory_space<vmem>>, %arg9: memref<16x32xf32, #tpu.memory_space<vmem>>) attributes {dimension_semantics = [#tpu.dimension_semantics<parallel>], iteration_bounds = array<i64: 1>, scalar_prefetch = 0 : i64, scratch_operands = 0 : i64, tpu.core_type = #tpu.core_type<tc>, window_params = [{transform_indices = @transform_0, window_bounds = array<i64: 16, 32>}, {transform_indices = @transform_1, window_bounds = array<i64: 16, 32>}, {pipeline_mode = #tpu.pipeline_mode<synchronous>, transform_indices = @transform_2, window_bounds = array<i64: 32, 64>}, {pipeline_mode = #tpu.pipeline_mode<synchronous>, transform_indices = @transform_3, window_bounds = array<i64: 32, 64>}, {pipeline_mode = #tpu.pipeline_mode<synchronous>, transform_indices = @transform_4, window_bounds = array<i64: 1, 64>}, {pipeline_mode = #tpu.pipeline_mode<synchronous>, transform_indices = @transform_5, window_bounds = array<i64: 32, 32>}, {pipeline_mode = #tpu.pipeline_mode<synchronous>, transform_indices = @transform_6, window_bounds = array<i64: 32, 32>}, {pipeline_mode = #tpu.pipeline_mode<synchronous>, transform_indices = @transform_7, window_bounds = array<i64: 1, 32>}, {transform_indices = @transform_8, window_bounds = array<i64: 16, 32>}]} {
    %c0 = arith.constant 0 : index
    %c0_0 = arith.constant 0 : index
    %0 = vector.load %arg1[%c0, %c0_0] : memref<16x32xf32, #tpu.memory_space<vmem>>, vector<16x32xf32>
    %c0_1 = arith.constant 0 : index
    %c0_2 = arith.constant 0 : index
    %1 = vector.load %arg2[%c0_1, %c0_2] : memref<16x32xf32, #tpu.memory_space<vmem>>, vector<16x32xf32>
    %2 = arith.truncf %0 : vector<16x32xf32> to vector<16x32xbf16>
    %3 = arith.truncf %1 : vector<16x32xf32> to vector<16x32xbf16>
    %c0_3 = arith.constant 0 : index
    %c0_4 = arith.constant 0 : index
    %4 = vector.load %arg3[%c0_3, %c0_4] : memref<32x64xbf16, #tpu.memory_space<vmem>>, vector<32x64xbf16>
    %cst = arith.constant dense<0.000000e+00> : vector<16x64xf32>
    %5 = tpu.matmul %2, %4, %cst {dimension_numbers = #tpu.dot_dimension_numbers<[1], [0], [0], [1], [0, 0, 1, 1], [], []>} : vector<16x32xbf16>, vector<32x64xbf16>, vector<16x64xf32> -> vector<16x64xf32>
    %c0_5 = arith.constant 0 : index
    %c0_6 = arith.constant 0 : index
    %6 = vector.load %arg4[%c0_5, %c0_6] : memref<32x64xbf16, #tpu.memory_space<vmem>>, vector<32x64xbf16>
    %cst_7 = arith.constant dense<0.000000e+00> : vector<16x64xf32>
    %7 = tpu.matmul %3, %6, %cst_7 {dimension_numbers = #tpu.dot_dimension_numbers<[1], [0], [0], [1], [0, 0, 1, 1], [], []>} : vector<16x32xbf16>, vector<32x64xbf16>, vector<16x64xf32> -> vector<16x64xf32>
    %8 = arith.addf %5, %7 : vector<16x64xf32>
    %c0_8 = arith.constant 0 : index
    %c0_9 = arith.constant 0 : index
    %9 = vector.load %arg5[%c0_8, %c0_9] : memref<1x64xf32, #tpu.memory_space<vmem>>, vector<1x64xf32>
    %10 = vector.broadcast %9 : vector<1x64xf32> to vector<16x64xf32>
    %11 = arith.addf %8, %10 : vector<16x64xf32>
    %12 = vector.extract_strided_slice %11 {offsets = [0, 0], sizes = [16, 32], strides = [1, 1]} : vector<16x64xf32> to vector<16x32xf32>
    %13 = arith.negf %12 : vector<16x32xf32>
    %14 = math.exp %13 : vector<16x32xf32>
    %cst_10 = arith.constant 1.000000e+00 : f32
    %15 = vector.broadcast %cst_10 : f32 to vector<16x32xf32>
    %16 = arith.addf %15, %14 : vector<16x32xf32>
    %17 = arith.divf %15, %16 : vector<16x32xf32>
    %18 = vector.extract_strided_slice %11 {offsets = [0, 32], sizes = [16, 32], strides = [1, 1]} : vector<16x64xf32> to vector<16x32xf32>
    %19 = arith.negf %18 : vector<16x32xf32>
    %20 = math.exp %19 : vector<16x32xf32>
    %cst_11 = arith.constant 1.000000e+00 : f32
    %21 = vector.broadcast %cst_11 : f32 to vector<16x32xf32>
    %22 = arith.addf %21, %20 : vector<16x32xf32>
    %23 = arith.divf %21, %22 : vector<16x32xf32>
    %24 = arith.mulf %17, %0 : vector<16x32xf32>
    %25 = arith.truncf %24 : vector<16x32xf32> to vector<16x32xbf16>
    %c0_12 = arith.constant 0 : index
    %c0_13 = arith.constant 0 : index
    %26 = vector.load %arg6[%c0_12, %c0_13] : memref<32x32xbf16, #tpu.memory_space<vmem>>, vector<32x32xbf16>
    %cst_14 = arith.constant dense<0.000000e+00> : vector<16x32xf32>
    %27 = tpu.matmul %25, %26, %cst_14 {dimension_numbers = #tpu.dot_dimension_numbers<[1], [0], [0], [1], [0, 0, 1, 1], [], []>} : vector<16x32xbf16>, vector<32x32xbf16>, vector<16x32xf32> -> vector<16x32xf32>
    %c0_15 = arith.constant 0 : index
    %c0_16 = arith.constant 0 : index
    %28 = vector.load %arg7[%c0_15, %c0_16] : memref<32x32xbf16, #tpu.memory_space<vmem>>, vector<32x32xbf16>
    %cst_17 = arith.constant dense<0.000000e+00> : vector<16x32xf32>
    %29 = tpu.matmul %3, %28, %cst_17 {dimension_numbers = #tpu.dot_dimension_numbers<[1], [0], [0], [1], [0, 0, 1, 1], [], []>} : vector<16x32xbf16>, vector<32x32xbf16>, vector<16x32xf32> -> vector<16x32xf32>
    %30 = arith.addf %27, %29 : vector<16x32xf32>
    %c0_18 = arith.constant 0 : index
    %c0_19 = arith.constant 0 : index
    %31 = vector.load %arg8[%c0_18, %c0_19] : memref<1x32xf32, #tpu.memory_space<vmem>>, vector<1x32xf32>
    %32 = vector.broadcast %31 : vector<1x32xf32> to vector<16x32xf32>
    %33 = arith.addf %30, %32 : vector<16x32xf32>
    %34 = math.tanh %33 : vector<16x32xf32>
    %35 = arith.subf %34, %0 : vector<16x32xf32>
    %36 = arith.mulf %23, %35 : vector<16x32xf32>
    %37 = arith.addf %0, %36 : vector<16x32xf32>
    %c0_20 = arith.constant 0 : index
    %c0_21 = arith.constant 0 : index
    %38 = vector.load %arg9[%c0_20, %c0_21] : memref<16x32xf32, #tpu.memory_space<vmem>>, vector<16x32xf32>
    tpu.vector_store %arg9[%c0_20, %c0_21], %37 {strides = array<i32>} : memref<16x32xf32, #tpu.memory_space<vmem>>, vector<16x32xf32>,
    return
  }
  func.func @transform_0(%arg0: i32) -> (i32, i32) {
    %c0_i32 = arith.constant 0 : i32
    %c0_i32_0 = arith.constant 0 : i32
    return %arg0, %c0_i32 : i32, i32
  }
  func.func @transform_1(%arg0: i32) -> (i32, i32) {
    %c0_i32 = arith.constant 0 : i32
    %c0_i32_0 = arith.constant 0 : i32
    return %arg0, %c0_i32 : i32, i32
  }
  func.func @transform_2(%arg0: i32) -> (i32, i32) {
    %c0_i32 = arith.constant 0 : i32
    %c0_i32_0 = arith.constant 0 : i32
    %c0_i32_1 = arith.constant 0 : i32
    return %c0_i32, %c0_i32_0 : i32, i32
  }
  func.func @transform_3(%arg0: i32) -> (i32, i32) {
    %c0_i32 = arith.constant 0 : i32
    %c0_i32_0 = arith.constant 0 : i32
    %c0_i32_1 = arith.constant 0 : i32
    return %c0_i32, %c0_i32_0 : i32, i32
  }
  func.func @transform_4(%arg0: i32) -> (i32, i32) {
    %c0_i32 = arith.constant 0 : i32
    %c0_i32_0 = arith.constant 0 : i32
    %c0_i32_1 = arith.constant 0 : i32
    return %c0_i32, %c0_i32_0 : i32, i32
  }
  func.func @transform_5(%arg0: i32) -> (i32, i32) {
    %c0_i32 = arith.constant 0 : i32
    %c0_i32_0 = arith.constant 0 : i32
    %c0_i32_1 = arith.constant 0 : i32
    return %c0_i32, %c0_i32_0 : i32, i32
  }
  func.func @transform_6(%arg0: i32) -> (i32, i32) {
    %c0_i32 = arith.constant 0 : i32
    %c0_i32_0 = arith.constant 0 : i32
    %c0_i32_1 = arith.constant 0 : i32
    return %c0_i32, %c0_i32_0 : i32, i32
  }
  func.func @transform_7(%arg0: i32) -> (i32, i32) {
    %c0_i32 = arith.constant 0 : i32
    %c0_i32_0 = arith.constant 0 : i32
    %c0_i32_1 = arith.constant 0 : i32
    return %c0_i32, %c0_i32_0 : i32, i32
  }
  func.func @transform_8(%arg0: i32) -> (i32, i32) {
    %c0_i32 = arith.constant 0 : i32
    %c0_i32_0 = arith.constant 0 : i32
    return %arg0, %c0_i32 : i32, i32
  }
}

</mosaic_0001>

<llo_original>
// kernel: gate_selection_layer.1
$region0: #{gate_selection_layer.1}
  #allocation0 [shape = 'u32[]', space=smem, size = 0x4, offset = 0x4, fixed_abs, tag = 'smem constant byte address 0x4 - core index']
  #allocation1 [shape = 'u32[144,128]{1,0:T(1,128)}', space=vmem, size = 0x12000, scoped, tag = 'internal scratch']
  %s0 = inlined_call_operand.hbm [shape: f32[16,32], index: 0, kind: input, shape index: {}]
  %s1 = inlined_call_operand.hbm [shape: f32[16,32], index: 1, kind: input, shape index: {}]
  %s2 = inlined_call_operand.hbm [shape: bf16[32,64], index: 2, kind: input, shape index: {}]
  %s3 = inlined_call_operand.vmem [shape: bf16[32,64], index: 3, kind: input, shape index: {}]
  %s4 = inlined_call_operand.hbm [shape: f32[1,64], index: 4, kind: input, shape index: {}]
  %s5 = inlined_call_operand.hbm [shape: bf16[32,32], index: 5, kind: input, shape index: {}]
  %s6 = inlined_call_operand.hbm [shape: bf16[32,32], index: 6, kind: input, shape index: {}]
  %s7 = inlined_call_operand.hbm [shape: f32[1,32], index: 7, kind: input, shape index: {}]
  %s8 = inlined_call_operand.hbm [shape: f32[16,32], index: 8, kind: output, shape index: {}]
  %s9 = sld [smem:[#allocation0]]
  $region70: #{gate_selection_layer.1} parent=0
    _
  %s11 = ssub.s32 1, %s9
  %s12 = scalar_select 0, %s11, %s9
  $region1: #{gate_selection_layer.1} parent=0
    #allocation2 [shape = 'u8[8192]{0}', space=vmem, size = 0x2000, scoped, tag = 'input window, operand 0, single buffered']
    #allocation3 [shape = 's32[1]{0}', space=sflag, size = 0x4, scoped, tag = 'scoped memory for gate_selection_layer.1']
    #allocation4 [shape = 's32[1]{0}', space=sflag, size = 0x4, scoped, tag = 'scoped memory for gate_selection_layer.1']
    #allocation5 [shape = 'u8[8192]{0}', space=vmem, size = 0x2000, scoped, tag = 'input window, operand 1, single buffered']
    #allocation6 [shape = 's32[1]{0}', space=sflag, size = 0x4, scoped, tag = 'scoped memory for gate_selection_layer.1']
    #allocation7 [shape = 'u8[8192]{0}', space=vmem, size = 0x2000, scoped, tag = 'input window, operand 2, single buffered']
    #allocation8 [shape = 'u8[512]{0}', space=vmem, size = 0x400, scoped, tag = 'input window, operand 4, single buffered']
    #allocation9 [shape = 's32[1]{0}', space=sflag, size = 0x4, scoped, tag = 'scoped memory for gate_selection_layer.1']
    #allocation10 [shape = 'u8[8192]{0}', space=vmem, size = 0x2000, scoped, tag = 'input window, operand 5, single buffered']
    #allocation11 [shape = 'u8[8192]{0}', space=vmem, size = 0x2000, scoped, tag = 'input window, operand 6, single buffered']
    #allocation12 [shape = 's32[1]{0}', space=sflag, size = 0x4, scoped, tag = 'scoped memory for gate_selection_layer.1']
    #allocation13 [shape = 'u8[512]{0}', space=vmem, size = 0x400, scoped, tag = 'input window, operand 7, single buffered']
    #allocation14 [shape = 'u8[8192]{0}', space=vmem, size = 0x2000, scoped, tag = 'output window, operand 0, single buffered']
    %13 = vsyncpa [#allocation3], 0
    %14 = vsyncpa [#allocation6], 0
    %15 = vsyncpa [#allocation9], 0
    %16 = vsyncpa [#allocation12], 0
    %17 = vsyncpa [#allocation4], 0
    // Predicated region
    $region2: #{gate_selection_layer.1} parent=1 // pred_check
      _
    $region3: #{gate_selection_layer.1} parent=1 // pred_check_branch
      %19 = sbr.rel (0) target = $region5
    $region4: #{gate_selection_layer.1} parent=1 // pred_region
      %s21 = ssub.s32 256, 256
      %22 = vsyncadd [#allocation3], %s21
      %s23 = sshll.u32 [#allocation2], 4
      %s24 = int_to_ptr.vmem [resolvable:$true] %s23
      %29 = dma.hbm_to_vmem [thread:$0]  %s0, 256, %s24, [#allocation3], 128, 128, 8
    $region5: #{gate_selection_layer.1} parent=1 // pred_fallthru
      _
    // Predicated region
    $region6: #{gate_selection_layer.1} parent=1 // pred_check
      _
    $region7: #{gate_selection_layer.1} parent=1 // pred_check_branch
      %31 = sbr.rel (0) target = $region9
    $region8: #{gate_selection_layer.1} parent=1 // pred_region
      %s33 = ssub.s32 256, 256
      %34 = vsyncadd [#allocation6], %s33
      %s35 = sshll.u32 [#allocation5], 4
      %s36 = int_to_ptr.vmem [resolvable:$true] %s35
      %41 = dma.hbm_to_vmem [thread:$0]  %s1, 256, %s36, [#allocation6], 128, 128, 8
    $region9: #{gate_selection_layer.1} parent=1 // pred_fallthru
      _
    // Predicated region
    $region10: #{gate_selection_layer.1} parent=1 // pred_check
      _
    $region11: #{gate_selection_layer.1} parent=1 // pred_check_branch
      %43 = sbr.rel (0) target = $region13
    $region12: #{gate_selection_layer.1} parent=1 // pred_region
      %s45 = ssub.s32 256, 256
      %46 = vsyncadd [#allocation6], %s45
      %s47 = sshll.u32 [#allocation7], 4
      %s48 = int_to_ptr.vmem [resolvable:$true] %s47
      %53 = dma.hbm_to_vmem [thread:$0]  %s2, 256, %s48, [#allocation6], 64, 64, 4
    $region13: #{gate_selection_layer.1} parent=1 // pred_fallthru
      _
    // Predicated region
    $region14: #{gate_selection_layer.1} parent=1 // pred_check
      _
    $region15: #{gate_selection_layer.1} parent=1 // pred_check_branch
      %55 = sbr.rel (0) target = $region17
    $region16: #{gate_selection_layer.1} parent=1 // pred_region
      _
    $region17: #{gate_selection_layer.1} parent=1 // pred_fallthru
      _
    // Predicated region
    $region18: #{gate_selection_layer.1} parent=1 // pred_check
      _
    $region19: #{gate_selection_layer.1} parent=1 // pred_check_branch
      %57 = sbr.rel (0) target = $region21
    $region20: #{gate_selection_layer.1} parent=1 // pred_region
      %s59 = ssub.s32 16, 16
      %60 = vsyncadd [#allocation9], %s59
      %s62 = sshll.u32 [#allocation8], 4
      %s63 = int_to_ptr.vmem [resolvable:$true] %s62
      %65 = dma.hbm_to_vmem [thread:$0]  %s4, 16, %s63, [#allocation9]
    $region21: #{gate_selection_layer.1} parent=1 // pred_fallthru
      _
    // Predicated region
    $region22: #{gate_selection_layer.1} parent=1 // pred_check
      _
    $region23: #{gate_selection_layer.1} parent=1 // pred_check_branch
      %67 = sbr.rel (0) target = $region25
    $region24: #{gate_selection_layer.1} parent=1 // pred_region
      %s69 = ssub.s32 256, 256
      %70 = vsyncadd [#allocation9], %s69
      %s71 = sshll.u32 [#allocation10], 4
      %s72 = int_to_ptr.vmem [resolvable:$true] %s71
      %77 = dma.hbm_to_vmem [thread:$0]  %s5, 256, %s72, [#allocation9], 64, 64, 4
    $region25: #{gate_selection_layer.1} parent=1 // pred_fallthru
      _
    // Predicated region
    $region26: #{gate_selection_layer.1} parent=1 // pred_check
      _
    $region27: #{gate_selection_layer.1} parent=1 // pred_check_branch
      %79 = sbr.rel (0) target = $region29
    $region28: #{gate_selection_layer.1} parent=1 // pred_region
      %s81 = ssub.s32 256, 256
      %82 = vsyncadd [#allocation12], %s81
      %s83 = sshll.u32 [#allocation11], 4
      %s84 = int_to_ptr.vmem [resolvable:$true] %s83
      %89 = dma.hbm_to_vmem [thread:$0]  %s6, 256, %s84, [#allocation12], 64, 64, 4
    $region29: #{gate_selection_layer.1} parent=1 // pred_fallthru
      _
    // Predicated region
    $region30: #{gate_selection_layer.1} parent=1 // pred_check
      _
    $region31: #{gate_selection_layer.1} parent=1 // pred_check_branch
      %91 = sbr.rel (0) target = $region33
    $region32: #{gate_selection_layer.1} parent=1 // pred_region
      %s93 = ssub.s32 16, 16
      %94 = vsyncadd [#allocation12], %s93
      %s96 = sshll.u32 [#allocation13], 4
      %s97 = int_to_ptr.vmem [resolvable:$true] %s96
      %99 = dma.hbm_to_vmem [thread:$0]  %s7, 16, %s97, [#allocation12]
    $region33: #{gate_selection_layer.1} parent=1 // pred_fallthru
      _
    // Predicated region
    $region34: #{gate_selection_layer.1} parent=1 // pred_check
      _
    $region35: #{gate_selection_layer.1} parent=1 // pred_check_branch
      %101 = sbr.rel (0) target = $region37
    $region36: #{gate_selection_layer.1} parent=1 // pred_region
      %102 = dma.done [#allocation3], 256
    $region37: #{gate_selection_layer.1} parent=1 // pred_fallthru
      _
    // Predicated region
    $region38: #{gate_selection_layer.1} parent=1 // pred_check
      _
    $region39: #{gate_selection_layer.1} parent=1 // pred_check_branch
      %104 = sbr.rel (0) target = $region41
    $region40: #{gate_selection_layer.1} parent=1 // pred_region
      %105 = dma.done [#allocation6], 256
    $region41: #{gate_selection_layer.1} parent=1 // pred_fallthru
      _
    // Predicated region
    $region42: #{gate_selection_layer.1} parent=1 // pred_check
      _
    $region43: #{gate_selection_layer.1} parent=1 // pred_check_branch
      %107 = sbr.rel (0) target = $region45
    $region44: #{gate_selection_layer.1} parent=1 // pred_region
      %108 = dma.done [#allocation6], 256
    $region45: #{gate_selection_layer.1} parent=1 // pred_fallthru
      _
    // Predicated region
    $region46: #{gate_selection_layer.1} parent=1 // pred_check
      _
    $region47: #{gate_selection_layer.1} parent=1 // pred_check_branch
      %110 = sbr.rel (0) target = $region49
    $region48: #{gate_selection_layer.1} parent=1 // pred_region
      %111 = dma.done [#allocation9], 16
    $region49: #{gate_selection_layer.1} parent=1 // pred_fallthru
      _
    // Predicated region
    $region50: #{gate_selection_layer.1} parent=1 // pred_check
      _
    $region51: #{gate_selection_layer.1} parent=1 // pred_check_branch
      %113 = sbr.rel (0) target = $region53
    $region52: #{gate_selection_layer.1} parent=1 // pred_region
      %114 = dma.done [#allocation9], 256
    $region53: #{gate_selection_layer.1} parent=1 // pred_fallthru
      _
    // Predicated region
    $region54: #{gate_selection_layer.1} parent=1 // pred_check
      _
    $region55: #{gate_selection_layer.1} parent=1 // pred_check_branch
      %116 = sbr.rel (0) target = $region57
    $region56: #{gate_selection_layer.1} parent=1 // pred_region
      %117 = dma.done [#allocation12], 256
    $region57: #{gate_selection_layer.1} parent=1 // pred_fallthru
      _
    // Predicated region
    $region58: #{gate_selection_layer.1} parent=1 // pred_check
      _
    $region59: #{gate_selection_layer.1} parent=1 // pred_check_branch
      %119 = sbr.rel (0) target = $region61
    $region60: #{gate_selection_layer.1} parent=1 // pred_region
      %120 = dma.done [#allocation12], 16
    $region61: #{gate_selection_layer.1} parent=1 // pred_fallthru
      _
    %v122 = vld [vmem:[#allocation2] sm:$0xff]
    %v123 = vld [vmem:[#allocation2 + $0x8] sm:$0xff]
    %v124 = vld [vmem:[#allocation5] sm:$0xff]
    %v125 = vld [vmem:[#allocation5 + $0x8] sm:$0xff]
    %v126 = vpack.c.bf16 %v123, %v122
    %v127 = vpack.c.bf16 %v125, %v124
    %v128 = vld [vmem:[#allocation7] sm:$0xf]
    %v129 = vld [vmem:[#allocation7 + $0x4] sm:$0xf]
    %v130 = vld [vmem:[#allocation7 + $0x8] sm:$0xf]
    %v131 = vld [vmem:[#allocation7 + $0xc] sm:$0xf]
    %v132 = vld [vmem:[%s3] sm:$0xf]
    %v133 = vld [vmem:[%s3 + $0x4] sm:$0xf]
    %v134 = vld [vmem:[%s3 + $0x8] sm:$0xf]
    %v135 = vld [vmem:[%s3 + $0xc] sm:$0xf]
    %v140 = vunpack.c.l.b16 %v132
    %v141 = vunpack.c.l.b16 %v133
    %v142 = vunpack.c.l.b16 %v134
    %v143 = vunpack.c.l.b16 %v135
    %v144 = vpack.c.b16 %v141, %v140
    %v145 = vpack.c.b16 %v143, %v142
    %vm148 = vcmask 261120
    %v150 = vsel %vm148, %v127, 0
    %152 = vmatprep.subr.bf16.mxu0 0
    %153 = vmatpush1.bf16.msra.mxu0 0
    %154 = vmatprep.subr.bf16.mxu0 0
    %155 = vmatpush1.bf16.msra.mxu0 0
    %156 = vmatprep.subr.bf16.mxu0 0
    %157 = vmatpush1.bf16.msra.mxu0 0
    %158 = vmatprep.subr.bf16.mxu0 0
    %159 = vmatpush1.bf16.msra.mxu0 0
    %160 = vmatprep.subr.bf16.mxu0 0
    %161 = vmatpush1.bf16.msra.mxu0 0
    %162 = vmatprep.subr.bf16.mxu0 0
    %163 = vmatpush1.bf16.msra.mxu0 0
    %164 = vmatprep.subr.bf16.mxu0 0
    %165 = vmatpush1.bf16.msra.mxu0 %v145
    %166 = vmatprep.subr.bf16.mxu0 0
    %167 = vmatpush1.bf16.msra.mxu0 %v144
    %168 = vmatprep.subr.bf16.mxu0 0
    %169 = vmatpush2.bf16.msra.mxu0 0
    %170 = vmatprep.subr.bf16.mxu0 0
    %171 = vmatpush2.bf16.msra.mxu0 0
    %172 = vmatprep.subr.bf16.mxu0 0
    %173 = vmatpush2.bf16.msra.mxu0 0
    %174 = vmatprep.subr.bf16.mxu0 0
    %175 = vmatpush2.bf16.msra.mxu0 0
    %176 = vmatprep.subr.bf16.mxu0 0
    %177 = vmatpush2.bf16.msra.mxu0 0
    %178 = vmatprep.subr.bf16.mxu0 0
    %179 = vmatpush2.bf16.msra.mxu0 0
    %180 = vmatprep.subr.bf16.mxu0 0
    %181 = vmatpush2.bf16.msra.mxu0 0
    %182 = vmatprep.subr.bf16.mxu0 0
    %183 = vmatpush2.bf16.msra.mxu0 0
    %184 = vmatprep.mubr.bf16.mxu0 0
    %185 = vmatmul.mubr.bf16.gmra.mxu0 %v150
    %v186 = vpop.f32.mrf.mxu0
    %v187 = vadd.f32 0.0, %v186
    %v188 = vpop.f32.mrf.mxu0
    %v189 = vpop.f32.mrf.mxu0
    %v190 = vadd.f32 0.0, %v189
    %v191 = vpop.f32.mrf.mxu0
    %192 = vdwg.mxu0
    %v197 = vunpack.c.l.b16 %v128
    %v198 = vunpack.c.l.b16 %v129
    %v199 = vunpack.c.l.b16 %v130
    %v200 = vunpack.c.l.b16 %v131
    %v201 = vpack.c.b16 %v198, %v197
    %v202 = vpack.c.b16 %v200, %v199
    %v206 = vsel %vm148, %v126, 0
    %208 = vmatprep.subr.bf16.mxu0 0
    %209 = vmatpush1.bf16.msra.mxu0 0
    %210 = vmatprep.subr.bf16.mxu0 0
    %211 = vmatpush1.bf16.msra.mxu0 0
    %212 = vmatprep.subr.bf16.mxu0 0
    %213 = vmatpush1.bf16.msra.mxu0 0
    %214 = vmatprep.subr.bf16.mxu0 0
    %215 = vmatpush1.bf16.msra.mxu0 0
    %216 = vmatprep.subr.bf16.mxu0 0
    %217 = vmatpush1.bf16.msra.mxu0 0
    %218 = vmatprep.subr.bf16.mxu0 0
    %219 = vmatpush1.bf16.msra.mxu0 0
    %220 = vmatprep.subr.bf16.mxu0 0
    %221 = vmatpush1.bf16.msra.mxu0 %v202
    %222 = vmatprep.subr.bf16.mxu0 0
    %223 = vmatpush1.bf16.msra.mxu0 %v201
    %224 = vmatprep.subr.bf16.mxu0 0
    %225 = vmatpush2.bf16.msra.mxu0 0
    %226 = vmatprep.subr.bf16.mxu0 0
    %227 = vmatpush2.bf16.msra.mxu0 0
    %228 = vmatprep.subr.bf16.mxu0 0
    %229 = vmatpush2.bf16.msra.mxu0 0
    %230 = vmatprep.subr.bf16.mxu0 0
    %231 = vmatpush2.bf16.msra.mxu0 0
    %232 = vmatprep.subr.bf16.mxu0 0
    %233 = vmatpush2.bf16.msra.mxu0 0
    %234 = vmatprep.subr.bf16.mxu0 0
    %235 = vmatpush2.bf16.msra.mxu0 0
    %236 = vmatprep.subr.bf16.mxu0 0
    %237 = vmatpush2.bf16.msra.mxu0 0
    %238 = vmatprep.subr.bf16.mxu0 0
    %239 = vmatpush2.bf16.msra.mxu0 0
    %240 = vmatprep.mubr.bf16.mxu0 0
    %241 = vmatmul.mubr.bf16.gmra.mxu0 %v206
    %v242 = vpop.f32.mrf.mxu0
    %v243 = vadd.f32 %v187, %v242
    %v244 = vpop.f32.mrf.mxu0
    %v245 = vpop.f32.mrf.mxu0
    %v246 = vadd.f32 %v190, %v245
    %v247 = vpop.f32.mrf.mxu0
    %248 = vdwg.mxu0
    %v249 = vld [vmem:[#allocation8] sm:$0x1]
    %v251 = vlaneseq
    %v252 = vshrl.u32 %v251, 7
    %v253 = vsub.s32 0, %v252
    %v254 = vrot.slane %v249, %v253
    %v256 = vadd.f32 %v243, %v254
    %v257 = vadd.f32 %v246, %v254
    %v258 = vxor.u32 %v256, 2147483648
    %v259 = vxor.u32 %v257, 2147483648
    %v260 = vmul.f32 %v258, 1.442695
    %v261 = vpow.pop %v260
    %v262 = vmul.f32 %v259, 1.442695
    %v263 = vpow.pop %v262
    %v264 = vadd.f32 %v261, 1.0
    %v265 = vadd.f32 %v263, 1.0
    %v266 = vrcp.pop %v264
    %v267 = vmul.f32 1.0, %v266
    %v268 = vrcp.pop %v265
    %v269 = vmul.f32 1.0, %v268
    %v270 = vmul.f32 %v267, %v122
    %v271 = vmul.f32 %v269, %v123
    %v272 = vpack.c.bf16 %v271, %v270
    %v273 = vld [vmem:[#allocation10] sm:$0xf]
    %v274 = vld [vmem:[#allocation10 + $0x4] sm:$0xf]
    %v275 = vld [vmem:[#allocation10 + $0x8] sm:$0xf]
    %v276 = vld [vmem:[#allocation10 + $0xc] sm:$0xf]
    %v277 = vld [vmem:[#allocation11] sm:$0xf]
    %v278 = vld [vmem:[#allocation11 + $0x4] sm:$0xf]
    %v279 = vld [vmem:[#allocation11 + $0x8] sm:$0xf]
    %v280 = vld [vmem:[#allocation11 + $0xc] sm:$0xf]
    %v285 = vunpack.c.l.b16 %v277
    %v286 = vunpack.c.l.b16 %v278
    %v287 = vunpack.c.l.b16 %v279
    %v288 = vunpack.c.l.b16 %v280
    %v289 = vpack.c.b16 %v286, %v285
    %v290 = vpack.c.b16 %v288, %v287
    %293 = vmatprep.subr.bf16.mxu0 0
    %294 = vmatpush1.bf16.msra.mxu0 0
    %295 = vmatprep.subr.bf16.mxu0 0
    %296 = vmatpush1.bf16.msra.mxu0 0
    %297 = vmatprep.subr.bf16.mxu0 0
    %298 = vmatpush1.bf16.msra.mxu0 0
    %299 = vmatprep.subr.bf16.mxu0 0
    %300 = vmatpush1.bf16.msra.mxu0 0
    %301 = vmatprep.subr.bf16.mxu0 0
    %302 = vmatpush1.bf16.msra.mxu0 0
    %303 = vmatprep.subr.bf16.mxu0 0
    %304 = vmatpush1.bf16.msra.mxu0 0
    %305 = vmatprep.subr.bf16.mxu0 0
    %306 = vmatpush1.bf16.msra.mxu0 %v290
    %307 = vmatprep.subr.bf16.mxu0 0
    %308 = vmatpush1.bf16.msra.mxu0 %v289
    %309 = vmatprep.subr.bf16.mxu0 0
    %310 = vmatpush2.bf16.msra.mxu0 0
    %311 = vmatprep.subr.bf16.mxu0 0
    %312 = vmatpush2.bf16.msra.mxu0 0
    %313 = vmatprep.subr.bf16.mxu0 0
    %314 = vmatpush2.bf16.msra.mxu0 0
    %315 = vmatprep.subr.bf16.mxu0 0
    %316 = vmatpush2.bf16.msra.mxu0 0
    %317 = vmatprep.subr.bf16.mxu0 0
    %318 = vmatpush2.bf16.msra.mxu0 0
    %319 = vmatprep.subr.bf16.mxu0 0
    %320 = vmatpush2.bf16.msra.mxu0 0
    %321 = vmatprep.subr.bf16.mxu0 0
    %322 = vmatpush2.bf16.msra.mxu0 0
    %323 = vmatprep.subr.bf16.mxu0 0
    %324 = vmatpush2.bf16.msra.mxu0 0
    %325 = vmatprep.mubr.bf16.mxu0 0
    %326 = vmatmul.mubr.bf16.gmra.mxu0 %v150
    %v327 = vpop.f32.mrf.mxu0
    %v328 = vadd.f32 0.0, %v327
    %v329 = vpop.f32.mrf.mxu0
    %v330 = vpop.f32.mrf.mxu0
    %v331 = vadd.f32 0.0, %v330
    %v332 = vpop.f32.mrf.mxu0
    %333 = vdwg.mxu0
    %v338 = vunpack.c.l.b16 %v273
    %v339 = vunpack.c.l.b16 %v274
    %v340 = vunpack.c.l.b16 %v275
    %v341 = vunpack.c.l.b16 %v276
    %v342 = vpack.c.b16 %v339, %v338
    %v343 = vpack.c.b16 %v341, %v340
    %v347 = vsel %vm148, %v272, 0
    %349 = vmatprep.subr.bf16.mxu0 0
    %350 = vmatpush1.bf16.msra.mxu0 0
    %351 = vmatprep.subr.bf16.mxu0 0
    %352 = vmatpush1.bf16.msra.mxu0 0
    %353 = vmatprep.subr.bf16.mxu0 0
    %354 = vmatpush1.bf16.msra.mxu0 0
    %355 = vmatprep.subr.bf16.mxu0 0
    %356 = vmatpush1.bf16.msra.mxu0 0
    %357 = vmatprep.subr.bf16.mxu0 0
    %358 = vmatpush1.bf16.msra.mxu0 0
    %359 = vmatprep.subr.bf16.mxu0 0
    %360 = vmatpush1.bf16.msra.mxu0 0
    %361 = vmatprep.subr.bf16.mxu0 0
    %362 = vmatpush1.bf16.msra.mxu0 %v343
    %363 = vmatprep.subr.bf16.mxu0 0
    %364 = vmatpush1.bf16.msra.mxu0 %v342
    %365 = vmatprep.subr.bf16.mxu0 0
    %366 = vmatpush2.bf16.msra.mxu0 0
    %367 = vmatprep.subr.bf16.mxu0 0
    %368 = vmatpush2.bf16.msra.mxu0 0
    %369 = vmatprep.subr.bf16.mxu0 0
    %370 = vmatpush2.bf16.msra.mxu0 0
    %371 = vmatprep.subr.bf16.mxu0 0
    %372 = vmatpush2.bf16.msra.mxu0 0
    %373 = vmatprep.subr.bf16.mxu0 0
    %374 = vmatpush2.bf16.msra.mxu0 0
    %375 = vmatprep.subr.bf16.mxu0 0
    %376 = vmatpush2.bf16.msra.mxu0 0
    %377 = vmatprep.subr.bf16.mxu0 0
    %378 = vmatpush2.bf16.msra.mxu0 0
    %379 = vmatprep.subr.bf16.mxu0 0
    %380 = vmatpush2.bf16.msra.mxu0 0
    %381 = vmatprep.mubr.bf16.mxu0 0
    %382 = vmatmul.mubr.bf16.gmra.mxu0 %v347
    %v383 = vpop.f32.mrf.mxu0
    %v384 = vadd.f32 %v328, %v383
    %v385 = vpop.f32.mrf.mxu0
    %v386 = vpop.f32.mrf.mxu0
    %v387 = vadd.f32 %v331, %v386
    %v388 = vpop.f32.mrf.mxu0
    %389 = vdwg.mxu0
    %v390 = vld [vmem:[#allocation13] sm:$0x1]
    %v392 = vlaneseq
    %v393 = vshrl.u32 %v392, 7
    %v394 = vsub.s32 0, %v393
    %v395 = vrot.slane %v390, %v394
    %v397 = vadd.f32 %v384, %v395
    %v398 = vadd.f32 %v387, %v395
    %v399 = vtanh.pop %v397
    %v400 = vtanh.pop %v398
    %v401 = vsub.f32 %v399, %v122
    %v402 = vsub.f32 %v400, %v123
    %405 = vrot.lane.b32.xlu0 %v401, 32
    %v406 = vpop.permute.xlu0 %405
    %407 = vrot.lane.b32.xlu0 %v402, 32
    %v408 = vpop.permute.xlu0 %407
    %v411 = vmul.f32 %v267, %v406
    %v412 = vmul.f32 %v269, %v408
    %415 = vrot.lane.b32.xlu0 %v411, 96
    %v416 = vpop.permute.xlu0 %415
    %417 = vrot.lane.b32.xlu0 %v412, 96
    %v418 = vpop.permute.xlu0 %417
    %v421 = vadd.f32 %v122, %v416
    %v422 = vadd.f32 %v123, %v418
    %423 = vst.msk [vmem:[#allocation14] sm:$0xff] %vm148, %v421
    %424 = vst.msk [vmem:[#allocation14 + $0x8] sm:$0xff] %vm148, %v422
    // Predicated region
    $region62: #{gate_selection_layer.1} parent=1 // pred_check
      _
    $region63: #{gate_selection_layer.1} parent=1 // pred_check_branch
      %426 = sbr.rel (0) target = $region65
    $region64: #{gate_selection_layer.1} parent=1 // pred_region
      %s428 = ssub.s32 256, 256
      %429 = vsyncadd [#allocation4], %s428
      %s430 = sshll.u32 [#allocation14], 4
      %s431 = int_to_ptr.vmem [resolvable:$true] %s430
      %436 = dma.vmem_to_hbm [thread:$0]  %s431, 256, %s8, [#allocation4], 128, 128, 8
    $region65: #{gate_selection_layer.1} parent=1 // pred_fallthru
      _
    // Predicated region
    $region66: #{gate_selection_layer.1} parent=1 // pred_check
      _
    $region67: #{gate_selection_layer.1} parent=1 // pred_check_branch
      %438 = sbr.rel (0) target = $region69
    $region68: #{gate_selection_layer.1} parent=1 // pred_region
      %439 = dma.done [#allocation4], 256
    $region69: #{gate_selection_layer.1} parent=1 // pred_fallthru
      _
    %440 = vsyncpa [#allocation3], 1
    %441 = vsyncpa [#allocation6], 1
    %442 = vsyncpa [#allocation9], 1
    %443 = vsyncpa [#allocation12], 1
    %444 = vsyncpa [#allocation4], 1

</llo_original>
